<compile_context>
chip_gen: v7x
topology: tpu7x:2x2x1
jax: 0.10.0
libtpu: 0.0.40
codegen_flags: <defaults>
</compile_context>

<pallas_src>
import jax
import jax.numpy as jnp
from jax import lax
from jax.experimental import pallas as pl
from jax.experimental.pallas import tpu as pltpu


def _mv_attn_kernel(v0_ref, v1_ref, w_ref, b_ref, out_ref):
    B = out_ref.shape[0]

    v0 = v0_ref[...]                                   # (B, D) f32
    v1 = v1_ref[...]                                   # (B, D) f32

    # In-kernel sublane concat of two (8,128)-aligned tiles (vreg copies, no HBM traffic).
    v = jnp.concatenate([v0, v1], axis=0)              # (2B, D) f32

    # y = v @ W^T with W kept in PyTorch (out, in) layout: contract last dims.
    # bf16 operands -> single MXU pass; f32 accumulation preserved.
    logits = lax.dot_general(
        v.astype(jnp.bfloat16),
        w_ref[...].astype(jnp.bfloat16),
        dimension_numbers=(((1,), (1,)), ((), ())),
        preferred_element_type=jnp.float32,
    ) + b_ref[...]                                     # (2B, D) f32

    gates = jax.nn.sigmoid(logits)                     # EUP transcendental, (2B, D)

    # Gate each view by its own weights (f32 VPU) and sum the two views.
    gated = v * gates                                  # (2B, D)
    out_ref[...] = (gated[:B, :] + gated[B:, :]).astype(out_ref.dtype)


def mv_attn_pallas(v0, v1, w, b):
    """v0, v1: (B, D); w: (D, D) in PyTorch (out, in) layout; b: (D,). Returns (B, D)."""
    B, D = v0.shape
    assert v1.shape == (B, D)
    assert w.shape == (D, D) and b.shape == (D,)
    # Whole-array VMEM blocks rely on clean vreg tiling at these sizes.
    assert D % 128 == 0 and B % 8 == 0, "expect lane-/sublane-aligned shapes"

    b2 = b.reshape(1, D)  # metadata-only reshape; broadcast happens in-kernel

    cost = pl.CostEstimate(
        flops=2 * (2 * B) * D * D,                     # one (2B,D) @ (D,D)^T matmul
        transcendentals=(2 * B) * D,                   # sigmoid on (2B, D)
        bytes_accessed=(2 * B * D + D * D + D + B * D) * 4,
    )

    vmem = pl.BlockSpec(memory_space=pltpu.MemorySpace.VMEM)  # whole array, single block
    return pl.pallas_call(
        _mv_attn_kernel,
        out_shape=jax.ShapeDtypeStruct((B, D), v0.dtype),
        in_specs=[vmem, vmem, vmem, vmem],
        out_specs=vmem,
        cost_estimate=cost,
    )(v0, v1, w, b2)


def mv_attn_ref(v0, v1, w, b):
    """Pure-JAX f32 reference mirroring the PyTorch module (y = x @ W.T + b)."""
    g0 = jax.nn.sigmoid(v0 @ w.T + b)
    g1 = jax.nn.sigmoid(v1 @ w.T + b)
    return v0 * g0 + v1 * g1


if __name__ == "__main__":
    B, D = 8, 128  # batch, inputdim

    key = jax.random.PRNGKey(0)
    k_v0, k_v1, k_w, k_b = jax.random.split(key, 4)

    v0 = jax.random.normal(k_v0, (B, D), dtype=jnp.float32)
    v1 = jax.random.normal(k_v1, (B, D), dtype=jnp.float32)

    # Deterministic parameter init (PyTorch Linear-style uniform bounds).
    bound = 1.0 / (D ** 0.5)
    w = jax.random.uniform(k_w, (D, D), minval=-bound, maxval=bound, dtype=jnp.float32)
    b = jax.random.uniform(k_b, (D,), minval=-bound, maxval=bound, dtype=jnp.float32)

    out = mv_attn_pallas(v0, v1, w, b)
    out = jax.block_until_ready(out)

    ref = mv_attn_ref(v0, v1, w, b)
    assert out.shape == (B, D)
    # Tolerance loosened for the bf16 MXU operands (f32 accumulation + f32 epilogue).
    assert jnp.allclose(out, ref, atol=2e-2, rtol=2e-2), "mismatch vs reference"

    print("KERNEL_OK")
</pallas_src>

<mosaic_0001>
module attributes {stable_mosaic.version = 11 : i64} {
  func.func @_mv_attn_kernel(%arg0: memref<8x128xf32, #tpu.memory_space<vmem>>, %arg1: memref<8x128xf32, #tpu.memory_space<vmem>>, %arg2: memref<128x128xf32, #tpu.memory_space<vmem>>, %arg3: memref<1x128xf32, #tpu.memory_space<vmem>>, %arg4: memref<8x128xf32, #tpu.memory_space<vmem>>) attributes {dimension_semantics = [], scalar_prefetch = 0 : i64, scratch_operands = 0 : i64, tpu.core_type = #tpu.core_type<tc>} {
    %c0 = arith.constant 0 : index
    %c0_0 = arith.constant 0 : index
    %0 = vector.load %arg0[%c0, %c0_0] : memref<8x128xf32, #tpu.memory_space<vmem>>, vector<8x128xf32>
    %c0_1 = arith.constant 0 : index
    %c0_2 = arith.constant 0 : index
    %1 = vector.load %arg1[%c0_1, %c0_2] : memref<8x128xf32, #tpu.memory_space<vmem>>, vector<8x128xf32>
    %2 = tpu.concatenate %0, %1 in 0 : vector<8x128xf32>, vector<8x128xf32> -> vector<16x128xf32>
    %3 = arith.truncf %2 : vector<16x128xf32> to vector<16x128xbf16>
    %c0_3 = arith.constant 0 : index
    %c0_4 = arith.constant 0 : index
    %4 = vector.load %arg2[%c0_3, %c0_4] : memref<128x128xf32, #tpu.memory_space<vmem>>, vector<128x128xf32>
    %5 = arith.truncf %4 : vector<128x128xf32> to vector<128x128xbf16>
    %cst = arith.constant dense<0.000000e+00> : vector<16x128xf32>
    %6 = tpu.matmul %3, %5, %cst {dimension_numbers = #tpu.dot_dimension_numbers<[1], [1], [0], [0], [0, 0, 1, 0], [], []>} : vector<16x128xbf16>, vector<128x128xbf16>, vector<16x128xf32> -> vector<16x128xf32>
    %c0_5 = arith.constant 0 : index
    %c0_6 = arith.constant 0 : index
    %7 = vector.load %arg3[%c0_5, %c0_6] : memref<1x128xf32, #tpu.memory_space<vmem>>, vector<1x128xf32>
    %8 = vector.broadcast %7 : vector<1x128xf32> to vector<16x128xf32>
    %9 = arith.addf %6, %8 : vector<16x128xf32>
    %10 = arith.negf %9 : vector<16x128xf32>
    %11 = math.exp %10 : vector<16x128xf32>
    %cst_7 = arith.constant 1.000000e+00 : f32
    %12 = vector.broadcast %cst_7 : f32 to vector<16x128xf32>
    %13 = arith.addf %12, %11 : vector<16x128xf32>
    %14 = arith.divf %12, %13 : vector<16x128xf32>
    %15 = arith.mulf %2, %14 : vector<16x128xf32>
    %16 = vector.extract_strided_slice %15 {offsets = [0, 0], sizes = [8, 128], strides = [1, 1]} : vector<16x128xf32> to vector<8x128xf32>
    %17 = vector.extract_strided_slice %15 {offsets = [8, 0], sizes = [8, 128], strides = [1, 1]} : vector<16x128xf32> to vector<8x128xf32>
    %18 = arith.addf %16, %17 : vector<8x128xf32>
    %c0_8 = arith.constant 0 : index
    %c0_9 = arith.constant 0 : index
    %19 = vector.load %arg4[%c0_8, %c0_9] : memref<8x128xf32, #tpu.memory_space<vmem>>, vector<8x128xf32>
    tpu.vector_store %arg4[%c0_8, %c0_9], %18 {strides = array<i32>} : memref<8x128xf32, #tpu.memory_space<vmem>>, vector<8x128xf32>,
    return
  }
}

</mosaic_0001>

<llo_original>
// kernel: tpu_custom_call.1
$region0: #{tpu_custom_call.1}
  #allocation0 [shape = 'u32[]', space=smem, size = 0x4, offset = 0x4, fixed_abs, tag = 'smem constant byte address 0x4 - core index']
  #allocation1 [shape = 'u32[144,128]{1,0:T(1,128)}', space=vmem, size = 0x12000, scoped, tag = 'internal scratch']
  %s0 = inlined_call_operand.hbm [shape: f32[8,128], index: 0, kind: input, shape index: {}]
  %s1 = inlined_call_operand.hbm [shape: f32[8,128], index: 1, kind: input, shape index: {}]
  %s2 = inlined_call_operand.hbm [shape: f32[128,128], index: 2, kind: input, shape index: {}]
  %s3 = inlined_call_operand.vmem [shape: f32[1,128], index: 3, kind: input, shape index: {}]
  %s4 = inlined_call_operand.hbm [shape: f32[8,128], index: 4, kind: output, shape index: {}]
  %s5 = sld [smem:[#allocation0]]
  $region38: #{tpu_custom_call.1} parent=0
    _
  %s7 = ssub.s32 1, %s5
  %s8 = scalar_select 0, %s7, %s5
  $region1: #{tpu_custom_call.1} parent=0
    #allocation2 [shape = 'u8[4096]{0}', space=vmem, size = 0x1000, scoped, tag = 'input window, operand 0, single buffered']
    #allocation3 [shape = 's32[1]{0}', space=sflag, size = 0x4, scoped, tag = 'scoped memory for tpu_custom_call.1']
    #allocation4 [shape = 's32[1]{0}', space=sflag, size = 0x4, scoped, tag = 'scoped memory for tpu_custom_call.1']
    #allocation5 [shape = 'u8[4096]{0}', space=vmem, size = 0x1000, scoped, tag = 'input window, operand 1, single buffered']
    #allocation6 [shape = 's32[1]{0}', space=sflag, size = 0x4, scoped, tag = 'scoped memory for tpu_custom_call.1']
    #allocation7 [shape = 'u8[65536]{0}', space=vmem, size = 0x10000, scoped, tag = 'input window, operand 2, single buffered']
    #allocation8 [shape = 'u8[4096]{0}', space=vmem, size = 0x1000, scoped, tag = 'output window, operand 0, single buffered']
    %9 = vsyncpa [#allocation3], 0
    %10 = vsyncpa [#allocation6], 0
    %11 = vsyncpa [#allocation4], 0
    // Predicated region
    $region2: #{tpu_custom_call.1} parent=1 // pred_check
      _
    $region3: #{tpu_custom_call.1} parent=1 // pred_check_branch
      %13 = sbr.rel (0) target = $region5
    $region4: #{tpu_custom_call.1} parent=1 // pred_region
      %s15 = ssub.s32 128, 128
      %16 = vsyncadd [#allocation3], %s15
      %s18 = sshll.u32 [#allocation2], 4
      %s19 = int_to_ptr.vmem [resolvable:$true] %s18
      %21 = dma.hbm_to_vmem [thread:$0]  %s0, 128, %s19, [#allocation3]
    $region5: #{tpu_custom_call.1} parent=1 // pred_fallthru
      _
    // Predicated region
    $region6: #{tpu_custom_call.1} parent=1 // pred_check
      _
    $region7: #{tpu_custom_call.1} parent=1 // pred_check_branch
      %23 = sbr.rel (0) target = $region9
    $region8: #{tpu_custom_call.1} parent=1 // pred_region
      %s25 = ssub.s32 128, 128
      %26 = vsyncadd [#allocation6], %s25
      %s28 = sshll.u32 [#allocation5], 4
      %s29 = int_to_ptr.vmem [resolvable:$true] %s28
      %31 = dma.hbm_to_vmem [thread:$0]  %s1, 128, %s29, [#allocation6]
    $region9: #{tpu_custom_call.1} parent=1 // pred_fallthru
      _
    // Predicated region
    $region10: #{tpu_custom_call.1} parent=1 // pred_check
      _
    $region11: #{tpu_custom_call.1} parent=1 // pred_check_branch
      %33 = sbr.rel (0) target = $region13
    $region12: #{tpu_custom_call.1} parent=1 // pred_region
      %s35 = ssub.s32 2048, 2048
      %36 = vsyncadd [#allocation6], %s35
      %s37 = sshll.u32 [#allocation7], 4
      %s38 = int_to_ptr.vmem [resolvable:$true] %s37
      %43 = dma.hbm_to_vmem [thread:$0]  %s2, 2048, %s38, [#allocation6], 128, 128, 8
    $region13: #{tpu_custom_call.1} parent=1 // pred_fallthru
      _
    // Predicated region
    $region14: #{tpu_custom_call.1} parent=1 // pred_check
      _
    $region15: #{tpu_custom_call.1} parent=1 // pred_check_branch
      %45 = sbr.rel (0) target = $region17
    $region16: #{tpu_custom_call.1} parent=1 // pred_region
      _
    $region17: #{tpu_custom_call.1} parent=1 // pred_fallthru
      _
    // Predicated region
    $region18: #{tpu_custom_call.1} parent=1 // pred_check
      _
    $region19: #{tpu_custom_call.1} parent=1 // pred_check_branch
      %47 = sbr.rel (0) target = $region21
    $region20: #{tpu_custom_call.1} parent=1 // pred_region
      %48 = dma.done [#allocation3], 128
    $region21: #{tpu_custom_call.1} parent=1 // pred_fallthru
      _
    // Predicated region
    $region22: #{tpu_custom_call.1} parent=1 // pred_check
      _
    $region23: #{tpu_custom_call.1} parent=1 // pred_check_branch
      %50 = sbr.rel (0) target = $region25
    $region24: #{tpu_custom_call.1} parent=1 // pred_region
      %51 = dma.done [#allocation6], 128
    $region25: #{tpu_custom_call.1} parent=1 // pred_fallthru
      _
    // Predicated region
    $region26: #{tpu_custom_call.1} parent=1 // pred_check
      _
    $region27: #{tpu_custom_call.1} parent=1 // pred_check_branch
      %53 = sbr.rel (0) target = $region29
    $region28: #{tpu_custom_call.1} parent=1 // pred_region
      %54 = dma.done [#allocation6], 2048
    $region29: #{tpu_custom_call.1} parent=1 // pred_fallthru
      _
    %v56 = vld [vmem:[#allocation2] sm:$0xff]
    %v57 = vld [vmem:[#allocation5] sm:$0xff]
    %v58 = vpack.c.bf16 %v57, %v56
    %v59 = vld [vmem:[#allocation7] sm:$0xff]
    %v60 = vld [vmem:[#allocation7 + $0x8] sm:$0xff]
    %v61 = vld [vmem:[#allocation7 + $0x10] sm:$0xff]
    %v62 = vld [vmem:[#allocation7 + $0x18] sm:$0xff]
    %v63 = vld [vmem:[#allocation7 + $0x20] sm:$0xff]
    %v64 = vld [vmem:[#allocation7 + $0x28] sm:$0xff]
    %v65 = vld [vmem:[#allocation7 + $0x30] sm:$0xff]
    %v66 = vld [vmem:[#allocation7 + $0x38] sm:$0xff]
    %v67 = vld [vmem:[#allocation7 + $0x40] sm:$0xff]
    %v68 = vld [vmem:[#allocation7 + $0x48] sm:$0xff]
    %v69 = vld [vmem:[#allocation7 + $0x50] sm:$0xff]
    %v70 = vld [vmem:[#allocation7 + $0x58] sm:$0xff]
    %v71 = vld [vmem:[#allocation7 + $0x60] sm:$0xff]
    %v72 = vld [vmem:[#allocation7 + $0x68] sm:$0xff]
    %v73 = vld [vmem:[#allocation7 + $0x70] sm:$0xff]
    %v74 = vld [vmem:[#allocation7 + $0x78] sm:$0xff]
    %v75 = vpack.c.bf16 %v60, %v59
    %v76 = vpack.c.bf16 %v62, %v61
    %v77 = vpack.c.bf16 %v64, %v63
    %v78 = vpack.c.bf16 %v66, %v65
    %v79 = vpack.c.bf16 %v68, %v67
    %v80 = vpack.c.bf16 %v70, %v69
    %v81 = vpack.c.bf16 %v72, %v71
    %v82 = vpack.c.bf16 %v74, %v73
    %v83 = vld [vmem:[%s3] sm:$0x1]
    %v85 = vlaneseq
    %v86 = vshrl.u32 %v85, 7
    %v87 = vsub.s32 0, %v86
    %v88 = vrot.slane %v83, %v87
    %90 = vmatprep.subr.bf16.mxu0 0
    %91 = vmatpush1.bf16.xpose.msra.mxu0 %v75
    %92 = vmatprep.subr.bf16.mxu0 0
    %93 = vmatpush1.bf16.xpose.msra.mxu0 %v76
    %94 = vmatprep.subr.bf16.mxu0 0
    %95 = vmatpush1.bf16.xpose.msra.mxu0 %v77
    %96 = vmatprep.subr.bf16.mxu0 0
    %97 = vmatpush1.bf16.xpose.msra.mxu0 %v78
    %98 = vmatprep.subr.bf16.mxu0 0
    %99 = vmatpush1.bf16.xpose.msra.mxu0 %v79
    %100 = vmatprep.subr.bf16.mxu0 0
    %101 = vmatpush1.bf16.xpose.msra.mxu0 %v80
    %102 = vmatprep.subr.bf16.mxu0 0
    %103 = vmatpush1.bf16.xpose.msra.mxu0 %v81
    %104 = vmatprep.subr.bf16.mxu0 0
    %105 = vmatpush1.bf16.xpose.msra.mxu0 %v82
    %106 = vmatprep.subr.bf16.mxu0 0
    %107 = vmatpush1.bf16.xpose.msra.mxu0 0
    %108 = vmatprep.subr.bf16.mxu0 0
    %109 = vmatpush1.bf16.xpose.msra.mxu0 0
    %110 = vmatprep.subr.bf16.mxu0 0
    %111 = vmatpush1.bf16.xpose.msra.mxu0 0
    %112 = vmatprep.subr.bf16.mxu0 0
    %113 = vmatpush1.bf16.xpose.msra.mxu0 0
    %114 = vmatprep.subr.bf16.mxu0 0
    %115 = vmatpush1.bf16.xpose.msra.mxu0 0
    %116 = vmatprep.subr.bf16.mxu0 0
    %117 = vmatpush1.bf16.xpose.msra.mxu0 0
    %118 = vmatprep.subr.bf16.mxu0 0
    %119 = vmatpush1.bf16.xpose.msra.mxu0 0
    %120 = vmatprep.subr.bf16.mxu0 0
    %121 = vmatpush1.bf16.xpose.msra.mxu0 0
    %122 = vmatprep.mubr.bf16.mxu0 0
    %123 = vmatmul.mubr.bf16.gmra.mrb[0].mxu0 %v58
    %v124 = vpop.f32.mrb[0].mxu0
    %v125 = vadd.f32 %v88, %v124
    %v126 = vpop.f32.mrb[0].mxu0
    %v127 = vpop.f32.mrb[0].mxu0
    %v128 = vadd.f32 %v88, %v127
    %v129 = vpop.f32.mrb[0].mxu0
    %130 = vdwg.mxu0
    %v131 = vxor.u32 %v125, 2147483648
    %v132 = vxor.u32 %v128, 2147483648
    %v133 = vmul.f32 %v131, 1.442695
    %v134 = vpow.pop %v133
    %v135 = vmul.f32 %v132, 1.442695
    %v136 = vpow.pop %v135
    %v137 = vadd.f32 %v134, 1.0
    %v138 = vadd.f32 %v136, 1.0
    %v139 = vrcp.pop %v137
    %v140 = vmul.f32 1.0, %v139
    %v141 = vrcp.pop %v138
    %v142 = vmul.f32 1.0, %v141
    %v143 = vmul.f32 %v56, %v140
    %v144 = vmul.f32 %v57, %v142
    %v145 = vadd.f32 %v143, %v144
    %146 = vst [vmem:[#allocation8] sm:$0xff] %v145
    // Predicated region
    $region30: #{tpu_custom_call.1} parent=1 // pred_check
      _
    $region31: #{tpu_custom_call.1} parent=1 // pred_check_branch
      %148 = sbr.rel (0) target = $region33
    $region32: #{tpu_custom_call.1} parent=1 // pred_region
      %s150 = ssub.s32 128, 128
      %151 = vsyncadd [#allocation4], %s150
      %s153 = sshll.u32 [#allocation8], 4
      %s154 = int_to_ptr.vmem [resolvable:$true] %s153
      %156 = dma.vmem_to_hbm [thread:$0]  %s154, 128, %s4, [#allocation4]
    $region33: #{tpu_custom_call.1} parent=1 // pred_fallthru
      _
    // Predicated region
    $region34: #{tpu_custom_call.1} parent=1 // pred_check
      _
    $region35: #{tpu_custom_call.1} parent=1 // pred_check_branch
      %158 = sbr.rel (0) target = $region37
    $region36: #{tpu_custom_call.1} parent=1 // pred_region
      %159 = dma.done [#allocation4], 128
    $region37: #{tpu_custom_call.1} parent=1 // pred_fallthru
      _
    %160 = vsyncpa [#allocation3], 1
    %161 = vsyncpa [#allocation6], 1
    %162 = vsyncpa [#allocation4], 1

</llo_original>
